<compile_context>
chip_gen: v5e
topology: v5e:2x2
jax: 0.10.0
libtpu: 0.0.40
codegen_flags: <defaults>
</compile_context>

<pallas_src>
import functools
import math

import jax
import jax.numpy as jnp
from jax.experimental import pallas as pl
from jax.experimental.pallas import tpu as pltpu


_MIB = 1024 * 1024


def _vmem_budgets():
    """Generation-aware (tile_budget_bytes, vmem_limit_bytes)."""
    vmem_cap = 128 * _MIB
    try:
        info = pltpu.get_tpu_info()
        vmem_cap = int(getattr(info, "vmem_capacity_bytes", vmem_cap))
    except Exception:
        pass
    if vmem_cap <= 64 * _MIB:           # v7x: 64 MiB physical per TensorCore
        return 40 * _MIB, 48 * _MIB
    return 80 * _MIB, 96 * _MIB         # v5e / v6e: 128 MiB physical


def _pick_tile_rows(n_rows, d, itemsize, vmem_budget):
    """Largest useful multiple-of-8 row tile.

    Accounts for 2 double-buffered (in + out) block tiles plus ~2 full-tile f32
    temporaries materialized inside the kernel body, and targets >= ~4 MiB of
    input bytes per grid step so DMA time dominates per-step overhead.
    """
    bytes_per_row = 4 * d * itemsize + 2 * d * 4
    fit = max(8, vmem_budget // bytes_per_row)
    target = max(1024, pl.cdiv(4 * _MIB, d * itemsize))   # ~4 MiB input tile
    tile = min(n_rows, fit, target)
    if tile >= 8:
        tile = (tile // 8) * 8
    return max(tile, 1)


def _layernorm_kernel(alpha_ref, bias_ref, x_ref, o_ref, *, eps, d):
    # Stats in f32 regardless of I/O dtype; one row tile [TILE_R, D] per step.
    x = x_ref[...].astype(jnp.float32)
    mean = jnp.sum(x, axis=-1, keepdims=True) * (1.0 / d)
    diff = x - mean
    # PyTorch x.std() default is the unbiased estimator (ddof=1);
    # eps is added to std (outside the sqrt), matching the reference module.
    var = jnp.sum(diff * diff, axis=-1, keepdims=True) * (1.0 / max(d - 1, 1))
    inv = pl.reciprocal(jnp.sqrt(var) + eps, approx=False)
    scale = alpha_ref[0] * inv                     # [TILE_R, 1] per-row scale
    shift = bias_ref[0] - mean * scale             # [TILE_R, 1] per-row shift
    # Re-read x_ref (cheap VMEM vld) instead of keeping `diff` live for the output:
    #   out = alpha*(x-mean)/(std+eps) + bias  ==  x*scale + shift
    o_ref[...] = (x_ref[...].astype(jnp.float32) * scale + shift).astype(o_ref.dtype)


def pallas_layer_norm(x, alpha, bias, *, eps=1e-6, tile_rows=None):
    """LayerNorm matching the PyTorch module: alpha*(x-mean)/(std+eps)+bias."""
    orig_shape = x.shape
    d = int(orig_shape[-1])
    r = int(math.prod(orig_shape[:-1])) if len(orig_shape) > 1 else 1
    xf = x.reshape(r, d)

    vmem_budget, vmem_limit = _vmem_budgets()
    if tile_rows is None:
        tile_r = _pick_tile_rows(r, d, x.dtype.itemsize, vmem_budget)
    else:
        tile_r = int(tile_rows)
    tile_r = max(1, min(tile_r, r))

    # Guarantee >= 2 grid steps (when rows allow) so the "parallel" row axis can
    # shard across both v7x TensorCores; costs at most one extra ~0.35us step.
    if pl.cdiv(r, tile_r) == 1 and r > 8:
        half = -(-r // 2)
        half = ((half + 7) // 8) * 8
        tile_r = min(tile_r, half)

    grid = (pl.cdiv(r, tile_r),)

    kernel = functools.partial(_layernorm_kernel, eps=float(eps), d=d)
    out = pl.pallas_call(
        kernel,
        out_shape=jax.ShapeDtypeStruct((r, d), x.dtype),
        grid=grid,
        in_specs=[
            pl.BlockSpec(memory_space=pltpu.MemorySpace.SMEM),   # alpha (1,)
            pl.BlockSpec(memory_space=pltpu.MemorySpace.SMEM),   # bias  (1,)
            pl.BlockSpec((tile_r, d), lambda i: (i, 0)),         # x row tile
        ],
        out_specs=pl.BlockSpec((tile_r, d), lambda i: (i, 0)),
        compiler_params=pltpu.CompilerParams(
            dimension_semantics=("parallel",),                   # megacore/TC sharding
            vmem_limit_bytes=vmem_limit,
        ),
    )(
        alpha.reshape(1).astype(jnp.float32),
        bias.reshape(1).astype(jnp.float32),
        xf,
    )
    return out.reshape(orig_shape)


def _layer_norm_ref(x, alpha, bias, eps):
    # Pure-JAX reference mirroring the PyTorch module exactly.
    mean = jnp.mean(x, axis=-1, keepdims=True)
    std = jnp.sqrt(jnp.var(x, axis=-1, keepdims=True, ddof=1))
    return alpha * (x - mean) / (std + eps) + bias


if __name__ == "__main__":
    key = jax.random.PRNGKey(0)
    k1, k2 = jax.random.split(key, 2)

    eps = 1e-6
    alpha = jnp.full((1,), 1.3, jnp.float32)   # non-default scalar params
    bias = jnp.full((1,), -0.2, jnp.float32)

    # Case 1: lane-dense feature dim (D=128); auto tiling -> >=2 grid steps.
    x1 = jax.random.normal(k1, (2, 128, 128), jnp.float32)
    y1 = pallas_layer_norm(x1, alpha, bias, eps=eps)

    # Case 2: small feature dim (D=32), full-dim block; rows split into 2 tiles.
    x2 = jax.random.normal(k2, (2, 8, 32), jnp.float32)
    y2 = pallas_layer_norm(x2, alpha, bias, eps=eps)

    y1, y2 = jax.block_until_ready((y1, y2))

    r1 = _layer_norm_ref(x1, alpha, bias, eps)
    r2 = _layer_norm_ref(x2, alpha, bias, eps)

    assert y1.shape == x1.shape and y2.shape == x2.shape
    assert bool(jnp.all(jnp.isfinite(y1))) and bool(jnp.all(jnp.isfinite(y2)))
    assert bool(jnp.max(jnp.abs(y1 - r1)) < 1e-4), float(jnp.max(jnp.abs(y1 - r1)))
    assert bool(jnp.max(jnp.abs(y2 - r2)) < 1e-4), float(jnp.max(jnp.abs(y2 - r2)))
    print("KERNEL_OK")
</pallas_src>

<mosaic_0001>
module attributes {stable_mosaic.version = 11 : i64} {
  func.func @_layernorm_kernel(%arg0: i32, %arg1: memref<1xf32, #tpu.memory_space<smem>>, %arg2: memref<1xf32, #tpu.memory_space<smem>>, %arg3: memref<128x128xf32, #tpu.memory_space<vmem>>, %arg4: memref<128x128xf32, #tpu.memory_space<vmem>>) attributes {dimension_semantics = [#tpu.dimension_semantics<parallel>], iteration_bounds = array<i64: 2>, scalar_prefetch = 0 : i64, scratch_operands = 0 : i64, tpu.core_type = #tpu.core_type<tc>, window_params = [{transform_indices = @transform_0, window_bounds = array<i64: 1>}, {transform_indices = @transform_1, window_bounds = array<i64: 1>}, {transform_indices = @transform_2, window_bounds = array<i64: 128, 128>}, {transform_indices = @transform_3, window_bounds = array<i64: 128, 128>}]} {
    %c0 = arith.constant 0 : index
    %c0_0 = arith.constant 0 : index
    %0 = vector.load %arg3[%c0, %c0_0] : memref<128x128xf32, #tpu.memory_space<vmem>>, vector<128x128xf32>
    %cst = arith.constant dense<0.000000e+00> : vector<128xf32>
    %1 = vector.multi_reduction <add>, %0, %cst [1] : vector<128x128xf32> to vector<128xf32>
    %2 = vector.shape_cast %1 : vector<128xf32> to vector<128x1xf32>
    %cst_1 = arith.constant 7.812500e-03 : f32
    %3 = vector.broadcast %cst_1 : f32 to vector<128x1xf32>
    %4 = arith.mulf %2, %3 : vector<128x1xf32>
    %5 = vector.broadcast %4 : vector<128x1xf32> to vector<128x128xf32>
    %6 = arith.subf %0, %5 : vector<128x128xf32>
    %7 = arith.mulf %6, %6 : vector<128x128xf32>
    %cst_2 = arith.constant dense<0.000000e+00> : vector<128xf32>
    %8 = vector.multi_reduction <add>, %7, %cst_2 [1] : vector<128x128xf32> to vector<128xf32>
    %9 = vector.shape_cast %8 : vector<128xf32> to vector<128x1xf32>
    %cst_3 = arith.constant 0.00787401571 : f32
    %10 = vector.broadcast %cst_3 : f32 to vector<128x1xf32>
    %11 = arith.mulf %9, %10 : vector<128x1xf32>
    %12 = math.sqrt %11 : vector<128x1xf32>
    %cst_4 = arith.constant 9.99999997E-7 : f32
    %13 = vector.broadcast %cst_4 : f32 to vector<128x1xf32>
    %14 = arith.addf %12, %13 : vector<128x1xf32>
    %15 = tpu.reciprocal %14 : vector<128x1xf32> -> vector<128x1xf32>
    %c0_5 = arith.constant 0 : index
    %16 = memref.load %arg1[%c0_5] : memref<1xf32, #tpu.memory_space<smem>>
    %17 = vector.broadcast %16 : f32 to vector<128x1xf32>
    %18 = arith.mulf %17, %15 : vector<128x1xf32>
    %c0_6 = arith.constant 0 : index
    %19 = memref.load %arg2[%c0_6] : memref<1xf32, #tpu.memory_space<smem>>
    %20 = arith.mulf %4, %18 : vector<128x1xf32>
    %21 = vector.broadcast %19 : f32 to vector<128x1xf32>
    %22 = arith.subf %21, %20 : vector<128x1xf32>
    %c0_7 = arith.constant 0 : index
    %c0_8 = arith.constant 0 : index
    %23 = vector.load %arg3[%c0_7, %c0_8] : memref<128x128xf32, #tpu.memory_space<vmem>>, vector<128x128xf32>
    %24 = vector.broadcast %18 : vector<128x1xf32> to vector<128x128xf32>
    %25 = arith.mulf %23, %24 : vector<128x128xf32>
    %26 = vector.broadcast %22 : vector<128x1xf32> to vector<128x128xf32>
    %27 = arith.addf %25, %26 : vector<128x128xf32>
    %c0_9 = arith.constant 0 : index
    %c0_10 = arith.constant 0 : index
    %28 = vector.load %arg4[%c0_9, %c0_10] : memref<128x128xf32, #tpu.memory_space<vmem>>, vector<128x128xf32>
    tpu.vector_store %arg4[%c0_9, %c0_10], %27 {strides = array<i32>} : memref<128x128xf32, #tpu.memory_space<vmem>>, vector<128x128xf32>,
    return
  }
  func.func @transform_0(%arg0: i32) -> i32 {
    %c0_i32 = arith.constant 0 : i32
    %c0_i32_0 = arith.constant 0 : i32
    return %c0_i32 : i32
  }
  func.func @transform_1(%arg0: i32) -> i32 {
    %c0_i32 = arith.constant 0 : i32
    %c0_i32_0 = arith.constant 0 : i32
    return %c0_i32 : i32
  }
  func.func @transform_2(%arg0: i32) -> (i32, i32) {
    %c0_i32 = arith.constant 0 : i32
    %c0_i32_0 = arith.constant 0 : i32
    return %arg0, %c0_i32 : i32, i32
  }
  func.func @transform_3(%arg0: i32) -> (i32, i32) {
    %c0_i32 = arith.constant 0 : i32
    %c0_i32_0 = arith.constant 0 : i32
    return %arg0, %c0_i32 : i32, i32
  }
}

</mosaic_0001>

<llo_original>
// kernel: tpu_custom_call.1
$region0: #{tpu_custom_call.1}
  #allocation0 [shape = 'u32[]', space=smem, size = 0x4, offset = 0x4, fixed_abs, tag = 'smem constant byte address 0x4 - core index']
  #allocation1 [shape = 'u32[72,128]{1,0:T(1,128)}', space=vmem, size = 0x9000, scoped, tag = 'internal scratch']
  #allocation2 [shape = 'f32[1]{0:T(128)S(6)}', space=smem, size = 0x200, scoped, tag = 'scoped memory for tpu_custom_call.1']
  #allocation3 [shape = 'f32[1]{0:T(128)S(6)}', space=smem, size = 0x200, scoped, tag = 'scoped memory for tpu_custom_call.1']
  %s0 = inlined_call_operand.<no memory space> [shape: f32[1], index: 0, kind: input, shape index: {}]
  %s1 = inlined_call_operand.<no memory space> [shape: f32[1], index: 1, kind: input, shape index: {}]
  %s2 = inlined_call_operand.hbm [shape: f32[256,128], index: 2, kind: input, shape index: {}]
  %s3 = inlined_call_operand.hbm [shape: f32[256,128], index: 3, kind: output, shape index: {}]
  %s4 = sld [smem:[#allocation0]]
  $region49: #{tpu_custom_call.1} parent=0
    _
  %s6 = ssub.s32 1, %s4
  %s7 = scalar_select 0, %s6, %s4
  %8 = sst [smem:[#allocation2]] %s0
  %9 = sst [smem:[#allocation3]] %s1
  $region1: #{tpu_custom_call.1} parent=0
    #allocation4 [shape = 'u8[131072]{0}', space=vmem, size = 0x20000, scoped, tag = 'input window, operand 2']
    #allocation5 [shape = 's32[2]{0}', space=sflag, size = 0x8, scoped, tag = 'scoped memory for tpu_custom_call.1']
    #allocation6 [shape = 's32[2]{0}', space=sflag, size = 0x8, scoped, tag = 'scoped memory for tpu_custom_call.1']
    #allocation7 [shape = 'u8[131072]{0}', space=vmem, size = 0x20000, scoped, tag = 'output window, operand 0']
    %10 = vsyncpa [#allocation5], 0
    %s11 = scalar_lea.sflag [#allocation5], 1
    %12 = vsyncpa %s11, 0
    %13 = vsyncpa [#allocation6], 0
    %s14 = scalar_lea.sflag [#allocation6], 1
    %15 = vsyncpa %s14, 0
    loop: start=0, step=1, limit=4
    $region2: #{tpu_custom_call.1} parent=1 // loop_pre_header
      _
    $region3: #{tpu_custom_call.1} parent=1 // loop_header
      %s17 = sphi 0, %s21
      %p18 = scmp.ge.s32.totalorder %s17, 4
      %s25 = sphi 0, %s25
      %s27 = sphi 0, %s25
      %s28 = sphi 0, %s27
      %s42 = sphi 0, %s28
      %s46 = sphi 0, %s46
      %s48 = sphi 0, %s46
      %s49 = sphi 0, %s48
      %s63 = sphi 0, %s49
      %s69 = sphi 0, %s71
      %s72 = sphi 0, %s69
      %s73 = sphi 0, %s72
      %s89 = sphi 0, %s73
      %s95 = sphi 0, %s97
      %s98 = sphi 0, %s95
      %s99 = sphi 0, %s98
      %s115 = sphi 0, %s99
    $region4: #{tpu_custom_call.1} parent=1 // loop_header_branch
      %20 = sbr.rel (%p18) target = $region8
    $region5: #{tpu_custom_call.1} parent=1 // loop_body
      %s22 = ssub.s32 %s17, 1
      %s23 = ssub.s32 %s17, 2
      %s24 = sadd.s32 %s17, 1
      %s26 = sadd.s32 %s25, 1
      %p29 = scmp.eq.s32.totalorder %s17, 1
      %p30 = scmp.ne.s32.totalorder %s25, %s27
      %p31 = scmp.eq.s32.totalorder %s17, 0
      %p32 = por %p30, %p31
      %p33 = scmp.ne.s32.totalorder %s25, %s27
      %p34 = scmp.eq.s32.totalorder %s22, 1
      %p35 = por %p33, %p34
      %p36 = scmp.ne.s32.totalorder %s27, %s28
      %p37 = scmp.eq.s32.totalorder %s22, 0
      %p38 = por %p36, %p37
      %p39 = scmp.ne.s32.totalorder %s27, %s28
      %p40 = scmp.eq.s32.totalorder %s23, 1
      %p41 = por %p39, %p40
      %p43 = scmp.ne.s32.totalorder %s28, %s42
      %p44 = scmp.eq.s32.totalorder %s23, 0
      %p45 = por %p43, %p44
      %s47 = sadd.s32 %s46, 1
      %p50 = scmp.eq.s32.totalorder %s17, 1
      %p51 = scmp.ne.s32.totalorder %s46, %s48
      %p52 = scmp.eq.s32.totalorder %s17, 0
      %p53 = por %p51, %p52
      %p54 = scmp.ne.s32.totalorder %s46, %s48
      %p55 = scmp.eq.s32.totalorder %s22, 1
      %p56 = por %p54, %p55
      %p57 = scmp.ne.s32.totalorder %s48, %s49
      %p58 = scmp.eq.s32.totalorder %s22, 0
      %p59 = por %p57, %p58
      %p60 = scmp.ne.s32.totalorder %s48, %s49
      %p61 = scmp.eq.s32.totalorder %s23, 1
      %p62 = por %p60, %p61
      %p64 = scmp.ne.s32.totalorder %s49, %s63
      %p65 = scmp.eq.s32.totalorder %s23, 0
      %p66 = por %p64, %p65
      %s67 = ssub.s32 %s17, %s24
      %p68 = scmp.eq.s32.totalorder %s67, 0
      %s70 = sadd.s32 %s69, 1
      %s71 = scalar_select %p68, %s69, %s70
      %p74 = pneg %p68
      %p75 = scmp.eq.s32.totalorder %s17, 1
      %p76 = por %p74, %p75
      %p77 = scmp.ne.s32.totalorder %s69, %s72
      %p78 = scmp.eq.s32.totalorder %s17, 0
      %p79 = por %p77, %p78
      %p80 = scmp.ne.s32.totalorder %s69, %s72
      %p81 = scmp.eq.s32.totalorder %s22, 1
      %p82 = por %p80, %p81
      %p83 = scmp.ne.s32.totalorder %s72, %s73
      %p84 = scmp.eq.s32.totalorder %s22, 0
      %p85 = por %p83, %p84
      %p86 = scmp.ne.s32.totalorder %s72, %s73
      %p87 = scmp.eq.s32.totalorder %s23, 1
      %p88 = por %p86, %p87
      %p90 = scmp.ne.s32.totalorder %s73, %s89
      %p91 = scmp.eq.s32.totalorder %s23, 0
      %p92 = por %p90, %p91
      %s93 = ssub.s32 %s17, %s24
      %p94 = scmp.eq.s32.totalorder %s93, 0
      %s96 = sadd.s32 %s95, 1
      %s97 = scalar_select %p94, %s95, %s96
      %p100 = pneg %p94
      %p101 = scmp.eq.s32.totalorder %s17, 1
      %p102 = por %p100, %p101
      %p103 = scmp.ne.s32.totalorder %s95, %s98
      %p104 = scmp.eq.s32.totalorder %s17, 0
      %p105 = por %p103, %p104
      %p106 = scmp.ne.s32.totalorder %s95, %s98
      %p107 = scmp.eq.s32.totalorder %s22, 1
      %p108 = por %p106, %p107
      %p109 = scmp.ne.s32.totalorder %s98, %s99
      %p110 = scmp.eq.s32.totalorder %s22, 0
      %p111 = por %p109, %p110
      %p112 = scmp.ne.s32.totalorder %s98, %s99
      %p113 = scmp.eq.s32.totalorder %s23, 1
      %p114 = por %p112, %p113
      %p116 = scmp.ne.s32.totalorder %s99, %s115
      %p117 = scmp.eq.s32.totalorder %s23, 0
      %p118 = por %p116, %p117
      %p119 = scmp.le.s32.totalorder 1, %s17
      %p120 = scmp.lt.s32.totalorder %s17, 3
      %p121 = pnand %p119, %p120
      %p122 = pneg %p121
      // Predicated region
      $region9: #{tpu_custom_call.1} parent=5 // pred_check
        _
      $region10: #{tpu_custom_call.1} parent=5 // pred_check_branch
        %124 = sbr.rel (%p121) target = $region12
      $region11: #{tpu_custom_call.1} parent=5 // pred_region
        %s125 = ssub.s32 %s17, 1
        // Predicated region
        $region13: #{tpu_custom_call.1} parent=11 // pred_check
          %p126 = pneg %p38
        $region14: #{tpu_custom_call.1} parent=11 // pred_check_branch
          %128 = sbr.rel (%p126) target = $region16
        $region15: #{tpu_custom_call.1} parent=11 // pred_region
          _
        $region16: #{tpu_custom_call.1} parent=11 // pred_fallthru
          _
        // Predicated region
        $region17: #{tpu_custom_call.1} parent=11 // pred_check
          %p129 = pneg %p59
        $region18: #{tpu_custom_call.1} parent=11 // pred_check_branch
          %131 = sbr.rel (%p129) target = $region20
        $region19: #{tpu_custom_call.1} parent=11 // pred_region
          _
        $region20: #{tpu_custom_call.1} parent=11 // pred_fallthru
          _
      $region12: #{tpu_custom_call.1} parent=5 // pred_fallthru
        _
      %p132 = scmp.lt.s32.totalorder %s17, 2
      // Predicated region
      $region21: #{tpu_custom_call.1} parent=5 // pred_check
        %p133 = pneg %p132
      $region22: #{tpu_custom_call.1} parent=5 // pred_check_branch
        %135 = sbr.rel (%p133) target = $region24
      $region23: #{tpu_custom_call.1} parent=5 // pred_region
        // Predicated region
        $region25: #{tpu_custom_call.1} parent=23 // pred_check
          %p136 = pneg %p79
        $region26: #{tpu_custom_call.1} parent=23 // pred_check_branch
          %138 = sbr.rel (%p136) target = $region28
        $region27: #{tpu_custom_call.1} parent=23 // pred_region
          %s139 = sand.u32 %s69, 1
          %s140 = scalar_lea.sflag [#allocation5], %s139
          %s141 = sand.u32 %s69, 1
          %s142 = smul.addr %s141, 128
          %s143 = scalar_lea.vmem [#allocation4], %s142
          %s144 = smul.u32 16, %s17
          %146 = vsyncadd %s140, 0
          %s147 = smul.addr %s144, 8
          %s148 = scalar_lea.hbm %s2, %s147
          %s149 = sshll.u32 %s148, 4
          %s150 = int_to_ptr.hbm [resolvable:$true] %s149
          %s151 = sshll.u32 %s143, 4
          %s152 = int_to_ptr.vmem [resolvable:$true] %s151
          %157 = dma.hbm_to_vmem [thread:$0]  %s150, 2048, %s152, %s140, 128, 128, 8
        $region28: #{tpu_custom_call.1} parent=23 // pred_fallthru
          _
      $region24: #{tpu_custom_call.1} parent=5 // pred_fallthru
        _
      %p158 = scmp.le.s32.totalorder 1, %s17
      %p159 = scmp.lt.s32.totalorder %s17, 3
      %p160 = pnand %p158, %p159
      %p161 = pneg %p160
      // Predicated region
      $region29: #{tpu_custom_call.1} parent=5 // pred_check
        _
      $region30: #{tpu_custom_call.1} parent=5 // pred_check_branch
        %163 = sbr.rel (%p160) target = $region32
      $region31: #{tpu_custom_call.1} parent=5 // pred_region
        %s164 = ssub.s32 %s17, 1
        %s165 = sand.u32 %s72, 1
        %s166 = scalar_lea.sflag [#allocation5], %s165
        %s167 = sand.u32 %s72, 1
        %s168 = smul.addr %s167, 128
        %s169 = scalar_lea.vmem [#allocation4], %s168
        // Predicated region
        $region33: #{tpu_custom_call.1} parent=31 // pred_check
          %p170 = pneg %p85
        $region34: #{tpu_custom_call.1} parent=31 // pred_check_branch
          %172 = sbr.rel (%p170) target = $region36
        $region35: #{tpu_custom_call.1} parent=31 // pred_region
          %174 = dma.done %s166, 2048
        $region36: #{tpu_custom_call.1} parent=31 // pred_fallthru
          _
        %p175 = pneg %p38
        %p176 = pneg %p35
        %p177 = pneg %p59
        %p178 = pneg %p56
        %s179 = sand.u32 %s72, 1
        %s180 = scalar_lea.sflag [#allocation5], %s179
        %s181 = sand.u32 %s72, 1
        %s182 = smul.addr %s181, 128
        %s183 = scalar_lea.vmem [#allocation4], %s182
        %p184 = pneg %p85
        %p185 = pneg %p82
        %p186 = pneg %p111
        %p187 = pneg %p108
        %s188 = sand.u32 %s98, 1
        %s189 = scalar_lea.sflag [#allocation6], %s188
        %s190 = sand.u32 %s98, 1
        %s191 = smul.addr %s190, 128
        %s192 = scalar_lea.vmem [#allocation7], %s191
        %s193 = smul.u32 16, %s22
        %s194 = smul.u32 16, %s22
        %v195 = vld [vmem:[%s169] sm:$0xff]
        %v196 = vld [vmem:[%s169 + $0x8] sm:$0xff]
        %v197 = vld [vmem:[%s169 + $0x10] sm:$0xff]
        %v198 = vld [vmem:[%s169 + $0x18] sm:$0xff]
        %v199 = vld [vmem:[%s169 + $0x20] sm:$0xff]
        %v200 = vld [vmem:[%s169 + $0x28] sm:$0xff]
        %v201 = vld [vmem:[%s169 + $0x30] sm:$0xff]
        %v202 = vld [vmem:[%s169 + $0x38] sm:$0xff]
        %v203 = vld [vmem:[%s169 + $0x40] sm:$0xff]
        %v204 = vld [vmem:[%s169 + $0x48] sm:$0xff]
        %v205 = vld [vmem:[%s169 + $0x50] sm:$0xff]
        %v206 = vld [vmem:[%s169 + $0x58] sm:$0xff]
        %v207 = vld [vmem:[%s169 + $0x60] sm:$0xff]
        %v208 = vld [vmem:[%s169 + $0x68] sm:$0xff]
        %v209 = vld [vmem:[%s169 + $0x70] sm:$0xff]
        %v210 = vld [vmem:[%s169 + $0x78] sm:$0xff]
        %211 = vadd.xlane.f32.xlu0 %v195
        %v212 = vpop.xlane.xlu0 %211
        %213 = vadd.xlane.f32.xlu0 %v196
        %v214 = vpop.xlane.xlu0 %213
        %215 = vadd.xlane.f32.xlu0 %v197
        %v216 = vpop.xlane.xlu0 %215
        %217 = vadd.xlane.f32.xlu0 %v198
        %v218 = vpop.xlane.xlu0 %217
        %219 = vadd.xlane.f32.xlu0 %v199
        %v220 = vpop.xlane.xlu0 %219
        %221 = vadd.xlane.f32.xlu0 %v200
        %v222 = vpop.xlane.xlu0 %221
        %223 = vadd.xlane.f32.xlu0 %v201
        %v224 = vpop.xlane.xlu0 %223
        %225 = vadd.xlane.f32.xlu0 %v202
        %v226 = vpop.xlane.xlu0 %225
        %227 = vadd.xlane.f32.xlu0 %v203
        %v228 = vpop.xlane.xlu0 %227
        %229 = vadd.xlane.f32.xlu0 %v204
        %v230 = vpop.xlane.xlu0 %229
        %231 = vadd.xlane.f32.xlu0 %v205
        %v232 = vpop.xlane.xlu0 %231
        %233 = vadd.xlane.f32.xlu0 %v206
        %v234 = vpop.xlane.xlu0 %233
        %235 = vadd.xlane.f32.xlu0 %v207
        %v236 = vpop.xlane.xlu0 %235
        %237 = vadd.xlane.f32.xlu0 %v208
        %v238 = vpop.xlane.xlu0 %237
        %239 = vadd.xlane.f32.xlu0 %v209
        %v240 = vpop.xlane.xlu0 %239
        %241 = vadd.xlane.f32.xlu0 %v210
        %v242 = vpop.xlane.xlu0 %241
        %v243 = vmul.f32 %v212, 0.0078125
        %v244 = vmul.f32 %v214, 0.0078125
        %v245 = vmul.f32 %v216, 0.0078125
        %v246 = vmul.f32 %v218, 0.0078125
        %v247 = vmul.f32 %v220, 0.0078125
        %v248 = vmul.f32 %v222, 0.0078125
        %v249 = vmul.f32 %v224, 0.0078125
        %v250 = vmul.f32 %v226, 0.0078125
        %v251 = vmul.f32 %v228, 0.0078125
        %v252 = vmul.f32 %v230, 0.0078125
        %v253 = vmul.f32 %v232, 0.0078125
        %v254 = vmul.f32 %v234, 0.0078125
        %v255 = vmul.f32 %v236, 0.0078125
        %v256 = vmul.f32 %v238, 0.0078125
        %v257 = vmul.f32 %v240, 0.0078125
        %v258 = vmul.f32 %v242, 0.0078125
        %v259 = vsub.f32 %v195, %v243
        %v260 = vsub.f32 %v196, %v244
        %v261 = vsub.f32 %v197, %v245
        %v262 = vsub.f32 %v198, %v246
        %v263 = vsub.f32 %v199, %v247
        %v264 = vsub.f32 %v200, %v248
        %v265 = vsub.f32 %v201, %v249
        %v266 = vsub.f32 %v202, %v250
        %v267 = vsub.f32 %v203, %v251
        %v268 = vsub.f32 %v204, %v252
        %v269 = vsub.f32 %v205, %v253
        %v270 = vsub.f32 %v206, %v254
        %v271 = vsub.f32 %v207, %v255
        %v272 = vsub.f32 %v208, %v256
        %v273 = vsub.f32 %v209, %v257
        %v274 = vsub.f32 %v210, %v258
        %v275 = vmul.f32 %v259, %v259
        %v276 = vmul.f32 %v260, %v260
        %v277 = vmul.f32 %v261, %v261
        %v278 = vmul.f32 %v262, %v262
        %v279 = vmul.f32 %v263, %v263
        %v280 = vmul.f32 %v264, %v264
        %v281 = vmul.f32 %v265, %v265
        %v282 = vmul.f32 %v266, %v266
        %v283 = vmul.f32 %v267, %v267
        %v284 = vmul.f32 %v268, %v268
        %v285 = vmul.f32 %v269, %v269
        %v286 = vmul.f32 %v270, %v270
        %v287 = vmul.f32 %v271, %v271
        %v288 = vmul.f32 %v272, %v272
        %v289 = vmul.f32 %v273, %v273
        %v290 = vmul.f32 %v274, %v274
        %291 = vadd.xlane.f32.xlu0 %v275
        %v292 = vpop.xlane.xlu0 %291
        %293 = vadd.xlane.f32.xlu0 %v276
        %v294 = vpop.xlane.xlu0 %293
        %295 = vadd.xlane.f32.xlu0 %v277
        %v296 = vpop.xlane.xlu0 %295
        %297 = vadd.xlane.f32.xlu0 %v278
        %v298 = vpop.xlane.xlu0 %297
        %299 = vadd.xlane.f32.xlu0 %v279
        %v300 = vpop.xlane.xlu0 %299
        %301 = vadd.xlane.f32.xlu0 %v280
        %v302 = vpop.xlane.xlu0 %301
        %303 = vadd.xlane.f32.xlu0 %v281
        %v304 = vpop.xlane.xlu0 %303
        %305 = vadd.xlane.f32.xlu0 %v282
        %v306 = vpop.xlane.xlu0 %305
        %307 = vadd.xlane.f32.xlu0 %v283
        %v308 = vpop.xlane.xlu0 %307
        %309 = vadd.xlane.f32.xlu0 %v284
        %v310 = vpop.xlane.xlu0 %309
        %311 = vadd.xlane.f32.xlu0 %v285
        %v312 = vpop.xlane.xlu0 %311
        %313 = vadd.xlane.f32.xlu0 %v286
        %v314 = vpop.xlane.xlu0 %313
        %315 = vadd.xlane.f32.xlu0 %v287
        %v316 = vpop.xlane.xlu0 %315
        %317 = vadd.xlane.f32.xlu0 %v288
        %v318 = vpop.xlane.xlu0 %317
        %319 = vadd.xlane.f32.xlu0 %v289
        %v320 = vpop.xlane.xlu0 %319
        %321 = vadd.xlane.f32.xlu0 %v290
        %v322 = vpop.xlane.xlu0 %321
        %v323 = vmul.f32 %v292, 0.007874016
        %v324 = vmul.f32 %v294, 0.007874016
        %v325 = vmul.f32 %v296, 0.007874016
        %v326 = vmul.f32 %v298, 0.007874016
        %v327 = vmul.f32 %v300, 0.007874016
        %v328 = vmul.f32 %v302, 0.007874016
        %v329 = vmul.f32 %v304, 0.007874016
        %v330 = vmul.f32 %v306, 0.007874016
        %v331 = vmul.f32 %v308, 0.007874016
        %v332 = vmul.f32 %v310, 0.007874016
        %v333 = vmul.f32 %v312, 0.007874016
        %v334 = vmul.f32 %v314, 0.007874016
        %v335 = vmul.f32 %v316, 0.007874016
        %v336 = vmul.f32 %v318, 0.007874016
        %v337 = vmul.f32 %v320, 0.007874016
        %v338 = vmul.f32 %v322, 0.007874016
        %v339 = vrsqrt.pop %v323
        %v340 = vmul.f32 %v339, %v323
        %v341 = vmul.f32 %v340, %v339
        %v342 = vmul.f32 0.5, %v341
        %v343 = vsub.f32 1.5, %v342
        %v344 = vmul.f32 %v339, %v343
        %v345 = vmul.f32 %v323, %v344
        %vm346 = vcmp.eq.f32.partialorder %v323, inf
        %v347 = vsel %vm346, %v323, %v345
        %vm348 = vcmp.eq.f32.partialorder %v323, 0.0
        %v349 = vand.u32 %v323, 2147483648
        %v350 = vsel %vm348, %v349, %v347
        %v351 = vrsqrt.pop %v324
        %v352 = vmul.f32 %v351, %v324
        %v353 = vmul.f32 %v352, %v351
        %v354 = vmul.f32 0.5, %v353
        %v355 = vsub.f32 1.5, %v354
        %v356 = vmul.f32 %v351, %v355
        %v357 = vmul.f32 %v324, %v356
        %vm358 = vcmp.eq.f32.partialorder %v324, inf
        %v359 = vsel %vm358, %v324, %v357
        %vm360 = vcmp.eq.f32.partialorder %v324, 0.0
        %v361 = vand.u32 %v324, 2147483648
        %v362 = vsel %vm360, %v361, %v359
        %v363 = vrsqrt.pop %v325
        %v364 = vmul.f32 %v363, %v325
        %v365 = vmul.f32 %v364, %v363
        %v366 = vmul.f32 0.5, %v365
        %v367 = vsub.f32 1.5, %v366
        %v368 = vmul.f32 %v363, %v367
        %v369 = vmul.f32 %v325, %v368
        %vm370 = vcmp.eq.f32.partialorder %v325, inf
        %v371 = vsel %vm370, %v325, %v369
        %vm372 = vcmp.eq.f32.partialorder %v325, 0.0
        %v373 = vand.u32 %v325, 2147483648
        %v374 = vsel %vm372, %v373, %v371
        %v375 = vrsqrt.pop %v326
        %v376 = vmul.f32 %v375, %v326
        %v377 = vmul.f32 %v376, %v375
        %v378 = vmul.f32 0.5, %v377
        %v379 = vsub.f32 1.5, %v378
        %v380 = vmul.f32 %v375, %v379
        %v381 = vmul.f32 %v326, %v380
        %vm382 = vcmp.eq.f32.partialorder %v326, inf
        %v383 = vsel %vm382, %v326, %v381
        %vm384 = vcmp.eq.f32.partialorder %v326, 0.0
        %v385 = vand.u32 %v326, 2147483648
        %v386 = vsel %vm384, %v385, %v383
        %v387 = vrsqrt.pop %v327
        %v388 = vmul.f32 %v387, %v327
        %v389 = vmul.f32 %v388, %v387
        %v390 = vmul.f32 0.5, %v389
        %v391 = vsub.f32 1.5, %v390
        %v392 = vmul.f32 %v387, %v391
        %v393 = vmul.f32 %v327, %v392
        %vm394 = vcmp.eq.f32.partialorder %v327, inf
        %v395 = vsel %vm394, %v327, %v393
        %vm396 = vcmp.eq.f32.partialorder %v327, 0.0
        %v397 = vand.u32 %v327, 2147483648
        %v398 = vsel %vm396, %v397, %v395
        %v399 = vrsqrt.pop %v328
        %v400 = vmul.f32 %v399, %v328
        %v401 = vmul.f32 %v400, %v399
        %v402 = vmul.f32 0.5, %v401
        %v403 = vsub.f32 1.5, %v402
        %v404 = vmul.f32 %v399, %v403
        %v405 = vmul.f32 %v328, %v404
        %vm406 = vcmp.eq.f32.partialorder %v328, inf
        %v407 = vsel %vm406, %v328, %v405
        %vm408 = vcmp.eq.f32.partialorder %v328, 0.0
        %v409 = vand.u32 %v328, 2147483648
        %v410 = vsel %vm408, %v409, %v407
        %v411 = vrsqrt.pop %v329
        %v412 = vmul.f32 %v411, %v329
        %v413 = vmul.f32 %v412, %v411
        %v414 = vmul.f32 0.5, %v413
        %v415 = vsub.f32 1.5, %v414
        %v416 = vmul.f32 %v411, %v415
        %v417 = vmul.f32 %v329, %v416
        %vm418 = vcmp.eq.f32.partialorder %v329, inf
        %v419 = vsel %vm418, %v329, %v417
        %vm420 = vcmp.eq.f32.partialorder %v329, 0.0
        %v421 = vand.u32 %v329, 2147483648
        %v422 = vsel %vm420, %v421, %v419
        %v423 = vrsqrt.pop %v330
        %v424 = vmul.f32 %v423, %v330
        %v425 = vmul.f32 %v424, %v423
        %v426 = vmul.f32 0.5, %v425
        %v427 = vsub.f32 1.5, %v426
        %v428 = vmul.f32 %v423, %v427
        %v429 = vmul.f32 %v330, %v428
        %vm430 = vcmp.eq.f32.partialorder %v330, inf
        %v431 = vsel %vm430, %v330, %v429
        %vm432 = vcmp.eq.f32.partialorder %v330, 0.0
        %v433 = vand.u32 %v330, 2147483648
        %v434 = vsel %vm432, %v433, %v431
        %v435 = vrsqrt.pop %v331
        %v436 = vmul.f32 %v435, %v331
        %v437 = vmul.f32 %v436, %v435
        %v438 = vmul.f32 0.5, %v437
        %v439 = vsub.f32 1.5, %v438
        %v440 = vmul.f32 %v435, %v439
        %v441 = vmul.f32 %v331, %v440
        %vm442 = vcmp.eq.f32.partialorder %v331, inf
        %v443 = vsel %vm442, %v331, %v441
        %vm444 = vcmp.eq.f32.partialorder %v331, 0.0
        %v445 = vand.u32 %v331, 2147483648
        %v446 = vsel %vm444, %v445, %v443
        %v447 = vrsqrt.pop %v332
        %v448 = vmul.f32 %v447, %v332
        %v449 = vmul.f32 %v448, %v447
        %v450 = vmul.f32 0.5, %v449
        %v451 = vsub.f32 1.5, %v450
        %v452 = vmul.f32 %v447, %v451
        %v453 = vmul.f32 %v332, %v452
        %vm454 = vcmp.eq.f32.partialorder %v332, inf
        %v455 = vsel %vm454, %v332, %v453
        %vm456 = vcmp.eq.f32.partialorder %v332, 0.0
        %v457 = vand.u32 %v332, 2147483648
        %v458 = vsel %vm456, %v457, %v455
        %v459 = vrsqrt.pop %v333
        %v460 = vmul.f32 %v459, %v333
        %v461 = vmul.f32 %v460, %v459
        %v462 = vmul.f32 0.5, %v461
        %v463 = vsub.f32 1.5, %v462
        %v464 = vmul.f32 %v459, %v463
        %v465 = vmul.f32 %v333, %v464
        %vm466 = vcmp.eq.f32.partialorder %v333, inf
        %v467 = vsel %vm466, %v333, %v465
        %vm468 = vcmp.eq.f32.partialorder %v333, 0.0
        %v469 = vand.u32 %v333, 2147483648
        %v470 = vsel %vm468, %v469, %v467
        %v471 = vrsqrt.pop %v334
        %v472 = vmul.f32 %v471, %v334
        %v473 = vmul.f32 %v472, %v471
        %v474 = vmul.f32 0.5, %v473
        %v475 = vsub.f32 1.5, %v474
        %v476 = vmul.f32 %v471, %v475
        %v477 = vmul.f32 %v334, %v476
        %vm478 = vcmp.eq.f32.partialorder %v334, inf
        %v479 = vsel %vm478, %v334, %v477
        %vm480 = vcmp.eq.f32.partialorder %v334, 0.0
        %v481 = vand.u32 %v334, 2147483648
        %v482 = vsel %vm480, %v481, %v479
        %v483 = vrsqrt.pop %v335
        %v484 = vmul.f32 %v483, %v335
        %v485 = vmul.f32 %v484, %v483
        %v486 = vmul.f32 0.5, %v485
        %v487 = vsub.f32 1.5, %v486
        %v488 = vmul.f32 %v483, %v487
        %v489 = vmul.f32 %v335, %v488
        %vm490 = vcmp.eq.f32.partialorder %v335, inf
        %v491 = vsel %vm490, %v335, %v489
        %vm492 = vcmp.eq.f32.partialorder %v335, 0.0
        %v493 = vand.u32 %v335, 2147483648
        %v494 = vsel %vm492, %v493, %v491
        %v495 = vrsqrt.pop %v336
        %v496 = vmul.f32 %v495, %v336
        %v497 = vmul.f32 %v496, %v495
        %v498 = vmul.f32 0.5, %v497
        %v499 = vsub.f32 1.5, %v498
        %v500 = vmul.f32 %v495, %v499
        %v501 = vmul.f32 %v336, %v500
        %vm502 = vcmp.eq.f32.partialorder %v336, inf
        %v503 = vsel %vm502, %v336, %v501
        %vm504 = vcmp.eq.f32.partialorder %v336, 0.0
        %v505 = vand.u32 %v336, 2147483648
        %v506 = vsel %vm504, %v505, %v503
        %v507 = vrsqrt.pop %v337
        %v508 = vmul.f32 %v507, %v337
        %v509 = vmul.f32 %v508, %v507
        %v510 = vmul.f32 0.5, %v509
        %v511 = vsub.f32 1.5, %v510
        %v512 = vmul.f32 %v507, %v511
        %v513 = vmul.f32 %v337, %v512
        %vm514 = vcmp.eq.f32.partialorder %v337, inf
        %v515 = vsel %vm514, %v337, %v513
        %vm516 = vcmp.eq.f32.partialorder %v337, 0.0
        %v517 = vand.u32 %v337, 2147483648
        %v518 = vsel %vm516, %v517, %v515
        %v519 = vrsqrt.pop %v338
        %v520 = vmul.f32 %v519, %v338
        %v521 = vmul.f32 %v520, %v519
        %v522 = vmul.f32 0.5, %v521
        %v523 = vsub.f32 1.5, %v522
        %v524 = vmul.f32 %v519, %v523
        %v525 = vmul.f32 %v338, %v524
        %vm526 = vcmp.eq.f32.partialorder %v338, inf
        %v527 = vsel %vm526, %v338, %v525
        %vm528 = vcmp.eq.f32.partialorder %v338, 0.0
        %v529 = vand.u32 %v338, 2147483648
        %v530 = vsel %vm528, %v529, %v527
        %v531 = vadd.f32 %v350, 1e-06
        %v532 = vadd.f32 %v362, 1e-06
        %v533 = vadd.f32 %v374, 1e-06
        %v534 = vadd.f32 %v386, 1e-06
        %v535 = vadd.f32 %v398, 1e-06
        %v536 = vadd.f32 %v410, 1e-06
        %v537 = vadd.f32 %v422, 1e-06
        %v538 = vadd.f32 %v434, 1e-06
        %v539 = vadd.f32 %v446, 1e-06
        %v540 = vadd.f32 %v458, 1e-06
        %v541 = vadd.f32 %v470, 1e-06
        %v542 = vadd.f32 %v482, 1e-06
        %v543 = vadd.f32 %v494, 1e-06
        %v544 = vadd.f32 %v506, 1e-06
        %v545 = vadd.f32 %v518, 1e-06
        %v546 = vadd.f32 %v530, 1e-06
        %v547 = vrcp.pop %v531
        %v548 = vmul.f32 %v531, %v547
        %v549 = vsub.f32 1.0, %v548
        %v550 = vmul.f32 %v547, %v549
        %v551 = vadd.f32 %v547, %v550
        %vm552 = vweird.f32 %v531
        %vm553 = vweird.f32 %v547
        %vm554 = vmor %vm552, %vm553
        %v555 = vsel %vm554, %v547, %v551
        %v556 = vand.u32 2147483647, %v531
        %vm557 = vcmp.eq.f32.partialorder %v556, 8.507059e+37
        %v558 = vand.u32 %v531, 2147483648
        %v559 = vor.u32 1.1754944e-38, %v558
        %v560 = vsel %vm557, %v559, %v555
        %v561 = vrcp.pop %v532
        %v562 = vmul.f32 %v532, %v561
        %v563 = vsub.f32 1.0, %v562
        %v564 = vmul.f32 %v561, %v563
        %v565 = vadd.f32 %v561, %v564
        %vm566 = vweird.f32 %v532
        %vm567 = vweird.f32 %v561
        %vm568 = vmor %vm566, %vm567
        %v569 = vsel %vm568, %v561, %v565
        %v570 = vand.u32 2147483647, %v532
        %vm571 = vcmp.eq.f32.partialorder %v570, 8.507059e+37
        %v572 = vand.u32 %v532, 2147483648
        %v573 = vor.u32 1.1754944e-38, %v572
        %v574 = vsel %vm571, %v573, %v569
        %v575 = vrcp.pop %v533
        %v576 = vmul.f32 %v533, %v575
        %v577 = vsub.f32 1.0, %v576
        %v578 = vmul.f32 %v575, %v577
        %v579 = vadd.f32 %v575, %v578
        %vm580 = vweird.f32 %v533
        %vm581 = vweird.f32 %v575
        %vm582 = vmor %vm580, %vm581
        %v583 = vsel %vm582, %v575, %v579
        %v584 = vand.u32 2147483647, %v533
        %vm585 = vcmp.eq.f32.partialorder %v584, 8.507059e+37
        %v586 = vand.u32 %v533, 2147483648
        %v587 = vor.u32 1.1754944e-38, %v586
        %v588 = vsel %vm585, %v587, %v583
        %v589 = vrcp.pop %v534
        %v590 = vmul.f32 %v534, %v589
        %v591 = vsub.f32 1.0, %v590
        %v592 = vmul.f32 %v589, %v591
        %v593 = vadd.f32 %v589, %v592
        %vm594 = vweird.f32 %v534
        %vm595 = vweird.f32 %v589
        %vm596 = vmor %vm594, %vm595
        %v597 = vsel %vm596, %v589, %v593
        %v598 = vand.u32 2147483647, %v534
        %vm599 = vcmp.eq.f32.partialorder %v598, 8.507059e+37
        %v600 = vand.u32 %v534, 2147483648
        %v601 = vor.u32 1.1754944e-38, %v600
        %v602 = vsel %vm599, %v601, %v597
        %v603 = vrcp.pop %v535
        %v604 = vmul.f32 %v535, %v603
        %v605 = vsub.f32 1.0, %v604
        %v606 = vmul.f32 %v603, %v605
        %v607 = vadd.f32 %v603, %v606
        %vm608 = vweird.f32 %v535
        %vm609 = vweird.f32 %v603
        %vm610 = vmor %vm608, %vm609
        %v611 = vsel %vm610, %v603, %v607
        %v612 = vand.u32 2147483647, %v535
        %vm613 = vcmp.eq.f32.partialorder %v612, 8.507059e+37
        %v614 = vand.u32 %v535, 2147483648
        %v615 = vor.u32 1.1754944e-38, %v614
        %v616 = vsel %vm613, %v615, %v611
        %v617 = vrcp.pop %v536
        %v618 = vmul.f32 %v536, %v617
        %v619 = vsub.f32 1.0, %v618
        %v620 = vmul.f32 %v617, %v619
        %v621 = vadd.f32 %v617, %v620
        %vm622 = vweird.f32 %v536
        %vm623 = vweird.f32 %v617
        %vm624 = vmor %vm622, %vm623
        %v625 = vsel %vm624, %v617, %v621
        %v626 = vand.u32 2147483647, %v536
        %vm627 = vcmp.eq.f32.partialorder %v626, 8.507059e+37
        %v628 = vand.u32 %v536, 2147483648
        %v629 = vor.u32 1.1754944e-38, %v628
        %v630 = vsel %vm627, %v629, %v625
        %v631 = vrcp.pop %v537
        %v632 = vmul.f32 %v537, %v631
        %v633 = vsub.f32 1.0, %v632
        %v634 = vmul.f32 %v631, %v633
        %v635 = vadd.f32 %v631, %v634
        %vm636 = vweird.f32 %v537
        %vm637 = vweird.f32 %v631
        %vm638 = vmor %vm636, %vm637
        %v639 = vsel %vm638, %v631, %v635
        %v640 = vand.u32 2147483647, %v537
        %vm641 = vcmp.eq.f32.partialorder %v640, 8.507059e+37
        %v642 = vand.u32 %v537, 2147483648
        %v643 = vor.u32 1.1754944e-38, %v642
        %v644 = vsel %vm641, %v643, %v639
        %v645 = vrcp.pop %v538
        %v646 = vmul.f32 %v538, %v645
        %v647 = vsub.f32 1.0, %v646
        %v648 = vmul.f32 %v645, %v647
        %v649 = vadd.f32 %v645, %v648
        %vm650 = vweird.f32 %v538
        %vm651 = vweird.f32 %v645
        %vm652 = vmor %vm650, %vm651
        %v653 = vsel %vm652, %v645, %v649
        %v654 = vand.u32 2147483647, %v538
        %vm655 = vcmp.eq.f32.partialorder %v654, 8.507059e+37
        %v656 = vand.u32 %v538, 2147483648
        %v657 = vor.u32 1.1754944e-38, %v656
        %v658 = vsel %vm655, %v657, %v653
        %v659 = vrcp.pop %v539
        %v660 = vmul.f32 %v539, %v659
        %v661 = vsub.f32 1.0, %v660
        %v662 = vmul.f32 %v659, %v661
        %v663 = vadd.f32 %v659, %v662
        %vm664 = vweird.f32 %v539
        %vm665 = vweird.f32 %v659
        %vm666 = vmor %vm664, %vm665
        %v667 = vsel %vm666, %v659, %v663
        %v668 = vand.u32 2147483647, %v539
        %vm669 = vcmp.eq.f32.partialorder %v668, 8.507059e+37
        %v670 = vand.u32 %v539, 2147483648
        %v671 = vor.u32 1.1754944e-38, %v670
        %v672 = vsel %vm669, %v671, %v667
        %v673 = vrcp.pop %v540
        %v674 = vmul.f32 %v540, %v673
        %v675 = vsub.f32 1.0, %v674
        %v676 = vmul.f32 %v673, %v675
        %v677 = vadd.f32 %v673, %v676
        %vm678 = vweird.f32 %v540
        %vm679 = vweird.f32 %v673
        %vm680 = vmor %vm678, %vm679
        %v681 = vsel %vm680, %v673, %v677
        %v682 = vand.u32 2147483647, %v540
        %vm683 = vcmp.eq.f32.partialorder %v682, 8.507059e+37
        %v684 = vand.u32 %v540, 2147483648
        %v685 = vor.u32 1.1754944e-38, %v684
        %v686 = vsel %vm683, %v685, %v681
        %v687 = vrcp.pop %v541
        %v688 = vmul.f32 %v541, %v687
        %v689 = vsub.f32 1.0, %v688
        %v690 = vmul.f32 %v687, %v689
        %v691 = vadd.f32 %v687, %v690
        %vm692 = vweird.f32 %v541
        %vm693 = vweird.f32 %v687
        %vm694 = vmor %vm692, %vm693
        %v695 = vsel %vm694, %v687, %v691
        %v696 = vand.u32 2147483647, %v541
        %vm697 = vcmp.eq.f32.partialorder %v696, 8.507059e+37
        %v698 = vand.u32 %v541, 2147483648
        %v699 = vor.u32 1.1754944e-38, %v698
        %v700 = vsel %vm697, %v699, %v695
        %v701 = vrcp.pop %v542
        %v702 = vmul.f32 %v542, %v701
        %v703 = vsub.f32 1.0, %v702
        %v704 = vmul.f32 %v701, %v703
        %v705 = vadd.f32 %v701, %v704
        %vm706 = vweird.f32 %v542
        %vm707 = vweird.f32 %v701
        %vm708 = vmor %vm706, %vm707
        %v709 = vsel %vm708, %v701, %v705
        %v710 = vand.u32 2147483647, %v542
        %vm711 = vcmp.eq.f32.partialorder %v710, 8.507059e+37
        %v712 = vand.u32 %v542, 2147483648
        %v713 = vor.u32 1.1754944e-38, %v712
        %v714 = vsel %vm711, %v713, %v709
        %v715 = vrcp.pop %v543
        %v716 = vmul.f32 %v543, %v715
        %v717 = vsub.f32 1.0, %v716
        %v718 = vmul.f32 %v715, %v717
        %v719 = vadd.f32 %v715, %v718
        %vm720 = vweird.f32 %v543
        %vm721 = vweird.f32 %v715
        %vm722 = vmor %vm720, %vm721
        %v723 = vsel %vm722, %v715, %v719
        %v724 = vand.u32 2147483647, %v543
        %vm725 = vcmp.eq.f32.partialorder %v724, 8.507059e+37
        %v726 = vand.u32 %v543, 2147483648
        %v727 = vor.u32 1.1754944e-38, %v726
        %v728 = vsel %vm725, %v727, %v723
        %v729 = vrcp.pop %v544
        %v730 = vmul.f32 %v544, %v729
        %v731 = vsub.f32 1.0, %v730
        %v732 = vmul.f32 %v729, %v731
        %v733 = vadd.f32 %v729, %v732
        %vm734 = vweird.f32 %v544
        %vm735 = vweird.f32 %v729
        %vm736 = vmor %vm734, %vm735
        %v737 = vsel %vm736, %v729, %v733
        %v738 = vand.u32 2147483647, %v544
        %vm739 = vcmp.eq.f32.partialorder %v738, 8.507059e+37
        %v740 = vand.u32 %v544, 2147483648
        %v741 = vor.u32 1.1754944e-38, %v740
        %v742 = vsel %vm739, %v741, %v737
        %v743 = vrcp.pop %v545
        %v744 = vmul.f32 %v545, %v743
        %v745 = vsub.f32 1.0, %v744
        %v746 = vmul.f32 %v743, %v745
        %v747 = vadd.f32 %v743, %v746
        %vm748 = vweird.f32 %v545
        %vm749 = vweird.f32 %v743
        %vm750 = vmor %vm748, %vm749
        %v751 = vsel %vm750, %v743, %v747
        %v752 = vand.u32 2147483647, %v545
        %vm753 = vcmp.eq.f32.partialorder %v752, 8.507059e+37
        %v754 = vand.u32 %v545, 2147483648
        %v755 = vor.u32 1.1754944e-38, %v754
        %v756 = vsel %vm753, %v755, %v751
        %v757 = vrcp.pop %v546
        %v758 = vmul.f32 %v546, %v757
        %v759 = vsub.f32 1.0, %v758
        %v760 = vmul.f32 %v757, %v759
        %v761 = vadd.f32 %v757, %v760
        %vm762 = vweird.f32 %v546
        %vm763 = vweird.f32 %v757
        %vm764 = vmor %vm762, %vm763
        %v765 = vsel %vm764, %v757, %v761
        %v766 = vand.u32 2147483647, %v546
        %vm767 = vcmp.eq.f32.partialorder %v766, 8.507059e+37
        %v768 = vand.u32 %v546, 2147483648
        %v769 = vor.u32 1.1754944e-38, %v768
        %v770 = vsel %vm767, %v769, %v765
        %s771 = sld [smem:[#allocation2]]
        %v772 = vstv %s771
        %v773 = vmul.f32 %v772, %v560
        %v774 = vmul.f32 %v772, %v574
        %v775 = vmul.f32 %v772, %v588
        %v776 = vmul.f32 %v772, %v602
        %v777 = vmul.f32 %v772, %v616
        %v778 = vmul.f32 %v772, %v630
        %v779 = vmul.f32 %v772, %v644
        %v780 = vmul.f32 %v772, %v658
        %v781 = vmul.f32 %v772, %v672
        %v782 = vmul.f32 %v772, %v686
        %v783 = vmul.f32 %v772, %v700
        %v784 = vmul.f32 %v772, %v714
        %v785 = vmul.f32 %v772, %v728
        %v786 = vmul.f32 %v772, %v742
        %v787 = vmul.f32 %v772, %v756
        %v788 = vmul.f32 %v772, %v770
        %s789 = sld [smem:[#allocation3]]
        %v790 = vmul.f32 %v243, %v773
        %v791 = vmul.f32 %v244, %v774
        %v792 = vmul.f32 %v245, %v775
        %v793 = vmul.f32 %v246, %v776
        %v794 = vmul.f32 %v247, %v777
        %v795 = vmul.f32 %v248, %v778
        %v796 = vmul.f32 %v249, %v779
        %v797 = vmul.f32 %v250, %v780
        %v798 = vmul.f32 %v251, %v781
        %v799 = vmul.f32 %v252, %v782
        %v800 = vmul.f32 %v253, %v783
        %v801 = vmul.f32 %v254, %v784
        %v802 = vmul.f32 %v255, %v785
        %v803 = vmul.f32 %v256, %v786
        %v804 = vmul.f32 %v257, %v787
        %v805 = vmul.f32 %v258, %v788
        %v806 = vstv %s789
        %v807 = vsub.f32 %v806, %v790
        %v808 = vsub.f32 %v806, %v791
        %v809 = vsub.f32 %v806, %v792
        %v810 = vsub.f32 %v806, %v793
        %v811 = vsub.f32 %v806, %v794
        %v812 = vsub.f32 %v806, %v795
        %v813 = vsub.f32 %v806, %v796
        %v814 = vsub.f32 %v806, %v797
        %v815 = vsub.f32 %v806, %v798
        %v816 = vsub.f32 %v806, %v799
        %v817 = vsub.f32 %v806, %v800
        %v818 = vsub.f32 %v806, %v801
        %v819 = vsub.f32 %v806, %v802
        %v820 = vsub.f32 %v806, %v803
        %v821 = vsub.f32 %v806, %v804
        %v822 = vsub.f32 %v806, %v805
        %v823 = vmul.f32 %v195, %v773
        %v824 = vmul.f32 %v196, %v774
        %v825 = vmul.f32 %v197, %v775
        %v826 = vmul.f32 %v198, %v776
        %v827 = vmul.f32 %v199, %v777
        %v828 = vmul.f32 %v200, %v778
        %v829 = vmul.f32 %v201, %v779
        %v830 = vmul.f32 %v202, %v780
        %v831 = vmul.f32 %v203, %v781
        %v832 = vmul.f32 %v204, %v782
        %v833 = vmul.f32 %v205, %v783
        %v834 = vmul.f32 %v206, %v784
        %v835 = vmul.f32 %v207, %v785
        %v836 = vmul.f32 %v208, %v786
        %v837 = vmul.f32 %v209, %v787
        %v838 = vmul.f32 %v210, %v788
        %v839 = vadd.f32 %v823, %v807
        %v840 = vadd.f32 %v824, %v808
        %v841 = vadd.f32 %v825, %v809
        %v842 = vadd.f32 %v826, %v810
        %v843 = vadd.f32 %v827, %v811
        %v844 = vadd.f32 %v828, %v812
        %v845 = vadd.f32 %v829, %v813
        %v846 = vadd.f32 %v830, %v814
        %v847 = vadd.f32 %v831, %v815
        %v848 = vadd.f32 %v832, %v816
        %v849 = vadd.f32 %v833, %v817
        %v850 = vadd.f32 %v834, %v818
        %v851 = vadd.f32 %v835, %v819
        %v852 = vadd.f32 %v836, %v820
        %v853 = vadd.f32 %v837, %v821
        %v854 = vadd.f32 %v838, %v822
        %855 = vst [vmem:[%s192] sm:$0xff] %v839
        %856 = vst [vmem:[%s192 + $0x8] sm:$0xff] %v840
        %857 = vst [vmem:[%s192 + $0x10] sm:$0xff] %v841
        %858 = vst [vmem:[%s192 + $0x18] sm:$0xff] %v842
        %859 = vst [vmem:[%s192 + $0x20] sm:$0xff] %v843
        %860 = vst [vmem:[%s192 + $0x28] sm:$0xff] %v844
        %861 = vst [vmem:[%s192 + $0x30] sm:$0xff] %v845
        %862 = vst [vmem:[%s192 + $0x38] sm:$0xff] %v846
        %863 = vst [vmem:[%s192 + $0x40] sm:$0xff] %v847
        %864 = vst [vmem:[%s192 + $0x48] sm:$0xff] %v848
        %865 = vst [vmem:[%s192 + $0x50] sm:$0xff] %v849
        %866 = vst [vmem:[%s192 + $0x58] sm:$0xff] %v850
        %867 = vst [vmem:[%s192 + $0x60] sm:$0xff] %v851
        %868 = vst [vmem:[%s192 + $0x68] sm:$0xff] %v852
        %869 = vst [vmem:[%s192 + $0x70] sm:$0xff] %v853
        %870 = vst [vmem:[%s192 + $0x78] sm:$0xff] %v854
        %s871 = sand.u32 %s98, 1
        %s872 = scalar_lea.sflag [#allocation6], %s871
        %s873 = sand.u32 %s98, 1
        %s874 = smul.addr %s873, 128
        %s875 = scalar_lea.vmem [#allocation7], %s874
        // Predicated region
        $region37: #{tpu_custom_call.1} parent=31 // pred_check
          %p876 = pneg %p108
        $region38: #{tpu_custom_call.1} parent=31 // pred_check_branch
          %878 = sbr.rel (%p876) target = $region40
        $region39: #{tpu_custom_call.1} parent=31 // pred_region
          %s879 = smul.u32 16, %s22
          %881 = vsyncadd %s872, 0
          %s882 = smul.addr %s879, 8
          %s883 = scalar_lea.hbm %s3, %s882
          %s884 = sshll.u32 %s875, 4
          %s885 = int_to_ptr.vmem [resolvable:$true] %s884
          %s886 = sshll.u32 %s883, 4
          %s887 = int_to_ptr.hbm [resolvable:$true] %s886
          %892 = dma.vmem_to_hbm [thread:$0]  %s885, 2048, %s887, %s872, 128, 128, 8
        $region40: #{tpu_custom_call.1} parent=31 // pred_fallthru
          _
      $region32: #{tpu_custom_call.1} parent=5 // pred_fallthru
        _
      %p893 = scmp.le.s32.totalorder 2, %s17
      // Predicated region
      $region41: #{tpu_custom_call.1} parent=5 // pred_check
        %p894 = pneg %p893
      $region42: #{tpu_custom_call.1} parent=5 // pred_check_branch
        %896 = sbr.rel (%p894) target = $region44
      $region43: #{tpu_custom_call.1} parent=5 // pred_region
        %s897 = ssub.s32 %s17, 2
        // Predicated region
        $region45: #{tpu_custom_call.1} parent=43 // pred_check
          %p898 = pneg %p114
        $region46: #{tpu_custom_call.1} parent=43 // pred_check_branch
          %900 = sbr.rel (%p898) target = $region48
        $region47: #{tpu_custom_call.1} parent=43 // pred_region
          %s901 = sand.u32 %s99, 1
          %s902 = scalar_lea.sflag [#allocation6], %s901
          %s903 = sand.u32 %s99, 1
          %s904 = smul.addr %s903, 128
          %s905 = scalar_lea.vmem [#allocation7], %s904
          %907 = dma.done %s902, 2048
        $region48: #{tpu_custom_call.1} parent=43 // pred_fallthru
          _
      $region44: #{tpu_custom_call.1} parent=5 // pred_fallthru
        _
    $region6: #{tpu_custom_call.1} parent=1 // loop_footer
      %s21 = sadd.s32 1, %s17
    $region7: #{tpu_custom_call.1} parent=1 // loop_footer_branch
      %16 = sbr.rel target = $region3
    $region8: #{tpu_custom_call.1} parent=1 // loop_exit
      _
    %908 = vsyncpa [#allocation5], 1
    %s909 = scalar_lea.sflag [#allocation5], 1
    %910 = vsyncpa %s909, 1
    %911 = vsyncpa [#allocation6], 1
    %s912 = scalar_lea.sflag [#allocation6], 1
    %913 = vsyncpa %s912, 1

</llo_original>
